<compile_context>
chip_gen: v6e
topology: v6e:2x2x1
jax: 0.10.0
libtpu: 0.0.40
codegen_flags: <defaults>
</compile_context>

<pallas_src>
import jax
import jax.numpy as jnp
from jax.experimental import pallas as pl
from jax.experimental.pallas import tpu as pltpu


def _elu(x):
    # ELU (alpha=1.0).  exp of the clamped value avoids inf intermediates for
    # large positive inputs; matches PyTorch ELU to f32 rounding in forward.
    # TODO(synk): switch to jnp.expm1 if tighter precision near zero is needed.
    return jnp.where(x > 0, x, jnp.exp(jnp.minimum(x, 0.0)) - 1.0)


def q_mlp_kernel(xT_ref, w1_ref, b1_ref, w2_ref, b2_ref, w3_ref, b3_ref, oT_ref):
    """One batch tile; activations are (features, batch_tile), batch on lanes."""
    cdt = w1_ref.dtype  # matmul-operand dtype (bf16 by default, f32 optional)

    xT = xT_ref[...]  # (state_dim, TB), already in cdt
    h = jnp.dot(w1_ref[...], xT, preferred_element_type=jnp.float32) + b1_ref[...]
    h = _elu(h)  # (32, TB) f32

    h = jnp.dot(w2_ref[...], h.astype(cdt),
                preferred_element_type=jnp.float32) + b2_ref[...]
    h = _elu(h)  # (32, TB) f32

    z = jnp.dot(w3_ref[...], h.astype(cdt),
                preferred_element_type=jnp.float32) + b3_ref[...]

    # Softmax over the feature (sublane) axis.
    z = z - jnp.max(z, axis=0, keepdims=True)
    e = jnp.exp(z)
    inv = pl.reciprocal(jnp.sum(e, axis=0, keepdims=True), approx=True)
    oT_ref[...] = (e * inv).astype(oT_ref.dtype)


def q_forward(x, params, *, block_batch=1024, compute_dtype=jnp.bfloat16):
    """Pallas forward pass of the Q network.

    x:      (batch, state_dim) float32
    params: PyTorch-layout weights: w1 (32, state_dim), b1 (32, 1),
            w2 (32, 32), b2 (32, 1), w3 (action_dim, 32), b3 (action_dim, 1)
    returns (batch, action_dim) float32 softmax probabilities.
    """
    batch, state_dim = x.shape
    hidden = params["w1"].shape[0]
    action_dim = params["w3"].shape[0]

    # Lane-aligned batch tile (multiple of 128), capped by block_batch.
    block_batch = max(128, (block_batch // 128) * 128)
    tb = min(block_batch, pl.cdiv(batch, 128) * 128)
    padded = pl.cdiv(batch, tb) * tb
    grid = (padded // tb,)

    # Put batch on the lane axis; pad tail columns (sliced off below).
    xT = x.T
    if padded != batch:
        xT = jnp.pad(xT, ((0, 0), (0, padded - batch)))
    xT = xT.astype(compute_dtype)

    w1 = params["w1"].astype(compute_dtype)
    w2 = params["w2"].astype(compute_dtype)
    w3 = params["w3"].astype(compute_dtype)
    b1 = params["b1"].astype(jnp.float32)
    b2 = params["b2"].astype(jnp.float32)
    b3 = params["b3"].astype(jnp.float32)

    const = lambda i: (0, 0)  # weights / biases stay VMEM-resident across steps

    out_T = pl.pallas_call(
        q_mlp_kernel,
        out_shape=jax.ShapeDtypeStruct((action_dim, padded), jnp.float32),
        grid=grid,
        in_specs=[
            pl.BlockSpec((state_dim, tb), lambda i: (0, i)),
            pl.BlockSpec((hidden, state_dim), const),
            pl.BlockSpec((hidden, 1), const),
            pl.BlockSpec((hidden, hidden), const),
            pl.BlockSpec((hidden, 1), const),
            pl.BlockSpec((action_dim, hidden), const),
            pl.BlockSpec((action_dim, 1), const),
        ],
        out_specs=pl.BlockSpec((action_dim, tb), lambda i: (0, i)),
        compiler_params=pltpu.CompilerParams(
            dimension_semantics=("parallel",)),
    )(xT, w1, b1, w2, b2, w3, b3)

    return out_T[:, :batch].T


def init_params(key, state_dim, action_dim, hidden=32):
    """Deterministic init, PyTorch nn.Linear layout (out, in) and bounds."""
    ks = jax.random.split(key, 6)

    def lin(kw, kb, fan_in, fan_out):
        bound = 1.0 / jnp.sqrt(jnp.float32(fan_in))
        w = jax.random.uniform(kw, (fan_out, fan_in), jnp.float32, -bound, bound)
        b = jax.random.uniform(kb, (fan_out, 1), jnp.float32, -bound, bound)
        return w, b

    w1, b1 = lin(ks[0], ks[1], state_dim, hidden)
    w2, b2 = lin(ks[2], ks[3], hidden, hidden)
    w3, b3 = lin(ks[4], ks[5], hidden, action_dim)
    return {"w1": w1, "b1": b1, "w2": w2, "b2": b2, "w3": w3, "b3": b3}


def q_forward_ref(x, p):
    """Pure-JAX f32 reference (mirrors the PyTorch module exactly)."""
    h1 = _elu(x @ p["w1"].T + p["b1"].T)
    h2 = _elu(h1 @ p["w2"].T + p["b2"].T)
    z = h2 @ p["w3"].T + p["b3"].T
    return jax.nn.softmax(z, axis=-1)


if __name__ == "__main__":
    key = jax.random.PRNGKey(0)
    k_x, k_p = jax.random.split(key)

    batch, state_dim, action_dim = 8, 4, 4
    x = jax.random.normal(k_x, (batch, state_dim), dtype=jnp.float32)
    params = init_params(k_p, state_dim, action_dim)

    ref = q_forward_ref(x, params)

    # f32-matmul path: tight structural check (approx reciprocal in the
    # softmax denominator is the only approximation).
    out_f32 = jax.block_until_ready(
        q_forward(x, params, compute_dtype=jnp.float32))
    assert out_f32.shape == (batch, action_dim)
    assert jnp.allclose(out_f32, ref, atol=5e-3, rtol=5e-3), "f32 path mismatch"

    # Default bf16-matmul path (MXU-friendly).
    out = jax.block_until_ready(q_forward(x, params))
    assert out.shape == (batch, action_dim)
    assert jnp.allclose(out, ref, atol=3e-2, rtol=3e-2), "bf16 path mismatch"
    assert jnp.allclose(jnp.sum(out, axis=-1), 1.0, atol=5e-3)

    print("KERNEL_OK")
</pallas_src>

<mosaic_0001>
module attributes {stable_mosaic.version = 11 : i64} {
  func.func @q_mlp_kernel(%arg0: i32, %arg1: memref<4x128xf32, #tpu.memory_space<vmem>>, %arg2: memref<32x4xf32, #tpu.memory_space<vmem>>, %arg3: memref<32x1xf32, #tpu.memory_space<vmem>>, %arg4: memref<32x32xf32, #tpu.memory_space<vmem>>, %arg5: memref<32x1xf32, #tpu.memory_space<vmem>>, %arg6: memref<4x32xf32, #tpu.memory_space<vmem>>, %arg7: memref<4x1xf32, #tpu.memory_space<vmem>>, %arg8: memref<4x128xf32, #tpu.memory_space<vmem>>) attributes {dimension_semantics = [#tpu.dimension_semantics<parallel>], iteration_bounds = array<i64: 1>, scalar_prefetch = 0 : i64, scratch_operands = 0 : i64, tpu.core_type = #tpu.core_type<tc>, window_params = [{transform_indices = @transform_0, window_bounds = array<i64: 4, 128>}, {pipeline_mode = #tpu.pipeline_mode<synchronous>, transform_indices = @transform_1, window_bounds = array<i64: 32, 4>}, {pipeline_mode = #tpu.pipeline_mode<synchronous>, transform_indices = @transform_2, window_bounds = array<i64: 32, 1>}, {pipeline_mode = #tpu.pipeline_mode<synchronous>, transform_indices = @transform_3, window_bounds = array<i64: 32, 32>}, {pipeline_mode = #tpu.pipeline_mode<synchronous>, transform_indices = @transform_4, window_bounds = array<i64: 32, 1>}, {pipeline_mode = #tpu.pipeline_mode<synchronous>, transform_indices = @transform_5, window_bounds = array<i64: 4, 32>}, {pipeline_mode = #tpu.pipeline_mode<synchronous>, transform_indices = @transform_6, window_bounds = array<i64: 4, 1>}, {transform_indices = @transform_7, window_bounds = array<i64: 4, 128>}]} {
    %c0 = arith.constant 0 : index
    %c0_0 = arith.constant 0 : index
    %0 = vector.load %arg1[%c0, %c0_0] : memref<4x128xf32, #tpu.memory_space<vmem>>, vector<4x128xf32>
    %c0_1 = arith.constant 0 : index
    %c0_2 = arith.constant 0 : index
    %1 = vector.load %arg2[%c0_1, %c0_2] : memref<32x4xf32, #tpu.memory_space<vmem>>, vector<32x4xf32>
    %cst = arith.constant dense<0.000000e+00> : vector<32x128xf32>
    %2 = tpu.matmul %1, %0, %cst {dimension_numbers = #tpu.dot_dimension_numbers<[1], [0], [0], [1], [0, 0, 1, 1], [], []>} : vector<32x4xf32>, vector<4x128xf32>, vector<32x128xf32> -> vector<32x128xf32>
    %c0_3 = arith.constant 0 : index
    %c0_4 = arith.constant 0 : index
    %3 = vector.load %arg3[%c0_3, %c0_4] : memref<32x1xf32, #tpu.memory_space<vmem>>, vector<32x1xf32>
    %4 = vector.broadcast %3 : vector<32x1xf32> to vector<32x128xf32>
    %5 = arith.addf %2, %4 : vector<32x128xf32>
    %cst_5 = arith.constant 0.000000e+00 : f32
    %6 = vector.broadcast %cst_5 : f32 to vector<32x128xf32>
    %7 = arith.cmpf ogt, %5, %6 : vector<32x128xf32>
    %cst_6 = arith.constant 0.000000e+00 : f32
    %8 = vector.broadcast %cst_6 : f32 to vector<32x128xf32>
    %9 = arith.minimumf %5, %8 : vector<32x128xf32>
    %10 = math.exp %9 : vector<32x128xf32>
    %cst_7 = arith.constant 1.000000e+00 : f32
    %11 = vector.broadcast %cst_7 : f32 to vector<32x128xf32>
    %12 = arith.subf %10, %11 : vector<32x128xf32>
    %13 = arith.select %7, %5, %12 : vector<32x128xi1>, vector<32x128xf32>
    %c0_8 = arith.constant 0 : index
    %c0_9 = arith.constant 0 : index
    %14 = vector.load %arg4[%c0_8, %c0_9] : memref<32x32xf32, #tpu.memory_space<vmem>>, vector<32x32xf32>
    %cst_10 = arith.constant dense<0.000000e+00> : vector<32x128xf32>
    %15 = tpu.matmul %14, %13, %cst_10 {dimension_numbers = #tpu.dot_dimension_numbers<[1], [0], [0], [1], [0, 0, 1, 1], [], []>} : vector<32x32xf32>, vector<32x128xf32>, vector<32x128xf32> -> vector<32x128xf32>
    %c0_11 = arith.constant 0 : index
    %c0_12 = arith.constant 0 : index
    %16 = vector.load %arg5[%c0_11, %c0_12] : memref<32x1xf32, #tpu.memory_space<vmem>>, vector<32x1xf32>
    %17 = vector.broadcast %16 : vector<32x1xf32> to vector<32x128xf32>
    %18 = arith.addf %15, %17 : vector<32x128xf32>
    %cst_13 = arith.constant 0.000000e+00 : f32
    %19 = vector.broadcast %cst_13 : f32 to vector<32x128xf32>
    %20 = arith.cmpf ogt, %18, %19 : vector<32x128xf32>
    %cst_14 = arith.constant 0.000000e+00 : f32
    %21 = vector.broadcast %cst_14 : f32 to vector<32x128xf32>
    %22 = arith.minimumf %18, %21 : vector<32x128xf32>
    %23 = math.exp %22 : vector<32x128xf32>
    %cst_15 = arith.constant 1.000000e+00 : f32
    %24 = vector.broadcast %cst_15 : f32 to vector<32x128xf32>
    %25 = arith.subf %23, %24 : vector<32x128xf32>
    %26 = arith.select %20, %18, %25 : vector<32x128xi1>, vector<32x128xf32>
    %c0_16 = arith.constant 0 : index
    %c0_17 = arith.constant 0 : index
    %27 = vector.load %arg6[%c0_16, %c0_17] : memref<4x32xf32, #tpu.memory_space<vmem>>, vector<4x32xf32>
    %cst_18 = arith.constant dense<0.000000e+00> : vector<4x128xf32>
    %28 = tpu.matmul %27, %26, %cst_18 {dimension_numbers = #tpu.dot_dimension_numbers<[1], [0], [0], [1], [0, 0, 1, 1], [], []>} : vector<4x32xf32>, vector<32x128xf32>, vector<4x128xf32> -> vector<4x128xf32>
    %c0_19 = arith.constant 0 : index
    %c0_20 = arith.constant 0 : index
    %29 = vector.load %arg7[%c0_19, %c0_20] : memref<4x1xf32, #tpu.memory_space<vmem>>, vector<4x1xf32>
    %30 = vector.broadcast %29 : vector<4x1xf32> to vector<4x128xf32>
    %31 = arith.addf %28, %30 : vector<4x128xf32>
    %cst_21 = arith.constant dense<0xFF800000> : vector<128xf32>
    %32 = vector.multi_reduction <maximumf>, %31, %cst_21 [0] : vector<4x128xf32> to vector<128xf32>
    %33 = vector.shape_cast %32 : vector<128xf32> to vector<1x128xf32>
    %34 = vector.broadcast %33 : vector<1x128xf32> to vector<4x128xf32>
    %35 = arith.subf %31, %34 : vector<4x128xf32>
    %36 = math.exp %35 : vector<4x128xf32>
    %cst_22 = arith.constant dense<0.000000e+00> : vector<128xf32>
    %37 = vector.multi_reduction <add>, %36, %cst_22 [0] : vector<4x128xf32> to vector<128xf32>
    %38 = vector.shape_cast %37 : vector<128xf32> to vector<1x128xf32>
    %39 = tpu.reciprocal %38 {approx = true} : vector<1x128xf32> -> vector<1x128xf32>
    %40 = vector.broadcast %39 : vector<1x128xf32> to vector<4x128xf32>
    %41 = arith.mulf %36, %40 : vector<4x128xf32>
    %c0_23 = arith.constant 0 : index
    %c0_24 = arith.constant 0 : index
    %42 = vector.load %arg8[%c0_23, %c0_24] : memref<4x128xf32, #tpu.memory_space<vmem>>, vector<4x128xf32>
    tpu.vector_store %arg8[%c0_23, %c0_24], %41 {strides = array<i32>} : memref<4x128xf32, #tpu.memory_space<vmem>>, vector<4x128xf32>,
    return
  }
  func.func @transform_0(%arg0: i32) -> (i32, i32) {
    %c0_i32 = arith.constant 0 : i32
    %c0_i32_0 = arith.constant 0 : i32
    return %c0_i32, %arg0 : i32, i32
  }
  func.func @transform_1(%arg0: i32) -> (i32, i32) {
    %c0_i32 = arith.constant 0 : i32
    %c0_i32_0 = arith.constant 0 : i32
    %c0_i32_1 = arith.constant 0 : i32
    return %c0_i32, %c0_i32_0 : i32, i32
  }
  func.func @transform_2(%arg0: i32) -> (i32, i32) {
    %c0_i32 = arith.constant 0 : i32
    %c0_i32_0 = arith.constant 0 : i32
    %c0_i32_1 = arith.constant 0 : i32
    return %c0_i32, %c0_i32_0 : i32, i32
  }
  func.func @transform_3(%arg0: i32) -> (i32, i32) {
    %c0_i32 = arith.constant 0 : i32
    %c0_i32_0 = arith.constant 0 : i32
    %c0_i32_1 = arith.constant 0 : i32
    return %c0_i32, %c0_i32_0 : i32, i32
  }
  func.func @transform_4(%arg0: i32) -> (i32, i32) {
    %c0_i32 = arith.constant 0 : i32
    %c0_i32_0 = arith.constant 0 : i32
    %c0_i32_1 = arith.constant 0 : i32
    return %c0_i32, %c0_i32_0 : i32, i32
  }
  func.func @transform_5(%arg0: i32) -> (i32, i32) {
    %c0_i32 = arith.constant 0 : i32
    %c0_i32_0 = arith.constant 0 : i32
    %c0_i32_1 = arith.constant 0 : i32
    return %c0_i32, %c0_i32_0 : i32, i32
  }
  func.func @transform_6(%arg0: i32) -> (i32, i32) {
    %c0_i32 = arith.constant 0 : i32
    %c0_i32_0 = arith.constant 0 : i32
    %c0_i32_1 = arith.constant 0 : i32
    return %c0_i32, %c0_i32_0 : i32, i32
  }
  func.func @transform_7(%arg0: i32) -> (i32, i32) {
    %c0_i32 = arith.constant 0 : i32
    %c0_i32_0 = arith.constant 0 : i32
    return %c0_i32, %arg0 : i32, i32
  }
}

</mosaic_0001>

<llo_original>
// kernel: tpu_custom_call.1
$region0: #{tpu_custom_call.1}
  #allocation0 [shape = 'u32[]', space=smem, size = 0x4, offset = 0x4, fixed_abs, tag = 'smem constant byte address 0x4 - core index']
  #allocation1 [shape = 'u32[144,128]{1,0:T(1,128)}', space=vmem, size = 0x12000, scoped, tag = 'internal scratch']
  %s0 = inlined_call_operand.vmem [shape: f32[4,128], index: 0, kind: input, shape index: {}]
  %s1 = inlined_call_operand.vmem [shape: f32[32,4], index: 1, kind: input, shape index: {}]
  %s2 = inlined_call_operand.vmem [shape: f32[32,1], index: 2, kind: input, shape index: {}]
  %s3 = inlined_call_operand.vmem [shape: f32[32,32], index: 3, kind: input, shape index: {}]
  %s4 = inlined_call_operand.vmem [shape: f32[32,1], index: 4, kind: input, shape index: {}]
  %s5 = inlined_call_operand.vmem [shape: f32[4,32], index: 5, kind: input, shape index: {}]
  %s6 = inlined_call_operand.vmem [shape: f32[4,1], index: 6, kind: input, shape index: {}]
  %s7 = inlined_call_operand.hbm [shape: f32[4,128], index: 7, kind: output, shape index: {}]
  %s8 = sld [smem:[#allocation0]]
  $region38: #{tpu_custom_call.1} parent=0
    _
  %s10 = ssub.s32 1, %s8
  %s11 = scalar_select 0, %s10, %s8
  $region1: #{tpu_custom_call.1} parent=0
    #allocation2 [shape = 'u8[2048]{0}', space=vmem, size = 0x800, scoped, tag = 'output window, operand 0, single buffered']
    #allocation3 [shape = 's32[1]{0}', space=sflag, size = 0x4, scoped, tag = 'scoped memory for tpu_custom_call.1']
    %12 = vsyncpa [#allocation3], 0
    // Predicated region
    $region2: #{tpu_custom_call.1} parent=1 // pred_check
      _
    $region3: #{tpu_custom_call.1} parent=1 // pred_check_branch
      %14 = sbr.rel (0) target = $region5
    $region4: #{tpu_custom_call.1} parent=1 // pred_region
      _
    $region5: #{tpu_custom_call.1} parent=1 // pred_fallthru
      _
    // Predicated region
    $region6: #{tpu_custom_call.1} parent=1 // pred_check
      _
    $region7: #{tpu_custom_call.1} parent=1 // pred_check_branch
      %16 = sbr.rel (0) target = $region9
    $region8: #{tpu_custom_call.1} parent=1 // pred_region
      _
    $region9: #{tpu_custom_call.1} parent=1 // pred_fallthru
      _
    // Predicated region
    $region10: #{tpu_custom_call.1} parent=1 // pred_check
      _
    $region11: #{tpu_custom_call.1} parent=1 // pred_check_branch
      %18 = sbr.rel (0) target = $region13
    $region12: #{tpu_custom_call.1} parent=1 // pred_region
      _
    $region13: #{tpu_custom_call.1} parent=1 // pred_fallthru
      _
    // Predicated region
    $region14: #{tpu_custom_call.1} parent=1 // pred_check
      _
    $region15: #{tpu_custom_call.1} parent=1 // pred_check_branch
      %20 = sbr.rel (0) target = $region17
    $region16: #{tpu_custom_call.1} parent=1 // pred_region
      _
    $region17: #{tpu_custom_call.1} parent=1 // pred_fallthru
      _
    // Predicated region
    $region18: #{tpu_custom_call.1} parent=1 // pred_check
      _
    $region19: #{tpu_custom_call.1} parent=1 // pred_check_branch
      %22 = sbr.rel (0) target = $region21
    $region20: #{tpu_custom_call.1} parent=1 // pred_region
      _
    $region21: #{tpu_custom_call.1} parent=1 // pred_fallthru
      _
    // Predicated region
    $region22: #{tpu_custom_call.1} parent=1 // pred_check
      _
    $region23: #{tpu_custom_call.1} parent=1 // pred_check_branch
      %24 = sbr.rel (0) target = $region25
    $region24: #{tpu_custom_call.1} parent=1 // pred_region
      _
    $region25: #{tpu_custom_call.1} parent=1 // pred_fallthru
      _
    // Predicated region
    $region26: #{tpu_custom_call.1} parent=1 // pred_check
      _
    $region27: #{tpu_custom_call.1} parent=1 // pred_check_branch
      %26 = sbr.rel (0) target = $region29
    $region28: #{tpu_custom_call.1} parent=1 // pred_region
      _
    $region29: #{tpu_custom_call.1} parent=1 // pred_fallthru
      _
    %v27 = vld [vmem:[%s0] sm:$0xf]
    %v28 = vld [vmem:[%s1] sm:$0xff]
    %v29 = vld [vmem:[%s1 + $0x8] sm:$0xff]
    %v30 = vld [vmem:[%s1 + $0x10] sm:$0xff]
    %v31 = vld [vmem:[%s1 + $0x18] sm:$0xff]
    %v32 = vld [vmem:[%s2] sm:$0xff]
    %v33 = vld [vmem:[%s2 + $0x8] sm:$0xff]
    %v34 = vld [vmem:[%s2 + $0x10] sm:$0xff]
    %v35 = vld [vmem:[%s2 + $0x18] sm:$0xff]
    %37 = vset.pattern.permute.xlu0 0
    %38 = vperm.xlu0 %37, %v32
    %v39 = vpop.permute.xlu0 %38
    %42 = vset.pattern.permute.xlu0 0
    %43 = vperm.xlu0 %42, %v33
    %v44 = vpop.permute.xlu0 %43
    %47 = vset.pattern.permute.xlu0 0
    %48 = vperm.xlu0 %47, %v34
    %v49 = vpop.permute.xlu0 %48
    %52 = vset.pattern.permute.xlu0 0
    %53 = vperm.xlu0 %52, %v35
    %v54 = vpop.permute.xlu0 %53
    %vm56 = vcmask 31744
    %v58 = vsel %vm56, %v28, 0
    %v61 = vsel %vm56, %v29, 0
    %v64 = vsel %vm56, %v30, 0
    %v67 = vsel %vm56, %v31, 0
    %vm69 = vcmask 1043456
    %v71 = vsel %vm69, %v27, 0
    %73 = vmatprep.subr.mxu0 0.0
    %74 = vmatpush1.msra.mxu0 0.0
    %75 = vmatprep.subr.mxu0 0.0
    %76 = vmatpush1.msra.mxu0 0.0
    %77 = vmatprep.subr.mxu0 0.0
    %78 = vmatpush1.msra.mxu0 0.0
    %79 = vmatprep.subr.mxu0 0.0
    %80 = vmatpush1.msra.mxu0 0.0
    %81 = vmatprep.subr.mxu0 0.0
    %82 = vmatpush1.msra.mxu0 0.0
    %83 = vmatprep.subr.mxu0 0.0
    %84 = vmatpush1.msra.mxu0 0.0
    %85 = vmatprep.subr.mxu0 0.0
    %86 = vmatpush1.msra.mxu0 0.0
    %87 = vmatprep.subr.mxu0 0.0
    %88 = vmatpush1.msra.mxu0 0.0
    %89 = vmatprep.subr.mxu0 0.0
    %90 = vmatpush1.msra.mxu0 0.0
    %91 = vmatprep.subr.mxu0 0.0
    %92 = vmatpush1.msra.mxu0 0.0
    %93 = vmatprep.subr.mxu0 0.0
    %94 = vmatpush1.msra.mxu0 0.0
    %95 = vmatprep.subr.mxu0 0.0
    %96 = vmatpush1.msra.mxu0 0.0
    %97 = vmatprep.subr.mxu0 0.0
    %98 = vmatpush1.msra.mxu0 0.0
    %99 = vmatprep.subr.mxu0 0.0
    %100 = vmatpush1.msra.mxu0 0.0
    %101 = vmatprep.subr.mxu0 0.0
    %102 = vmatpush1.msra.mxu0 0.0
    %103 = vmatprep.subr.mxu0 0.0
    %104 = vmatpush1.msra.mxu0 %v71
    %105 = vmatprep.subr.mxu0 0.0
    %106 = vmatpush2.msra.mxu0 0.0
    %107 = vmatprep.subr.mxu0 0.0
    %108 = vmatpush2.msra.mxu0 0.0
    %109 = vmatprep.subr.mxu0 0.0
    %110 = vmatpush2.msra.mxu0 0.0
    %111 = vmatprep.subr.mxu0 0.0
    %112 = vmatpush2.msra.mxu0 0.0
    %113 = vmatprep.subr.mxu0 0.0
    %114 = vmatpush2.msra.mxu0 0.0
    %115 = vmatprep.subr.mxu0 0.0
    %116 = vmatpush2.msra.mxu0 0.0
    %117 = vmatprep.subr.mxu0 0.0
    %118 = vmatpush2.msra.mxu0 0.0
    %119 = vmatprep.subr.mxu0 0.0
    %120 = vmatpush2.msra.mxu0 0.0
    %121 = vmatprep.subr.mxu0 0.0
    %122 = vmatpush2.msra.mxu0 0.0
    %123 = vmatprep.subr.mxu0 0.0
    %124 = vmatpush2.msra.mxu0 0.0
    %125 = vmatprep.subr.mxu0 0.0
    %126 = vmatpush2.msra.mxu0 0.0
    %127 = vmatprep.subr.mxu0 0.0
    %128 = vmatpush2.msra.mxu0 0.0
    %129 = vmatprep.subr.mxu0 0.0
    %130 = vmatpush2.msra.mxu0 0.0
    %131 = vmatprep.subr.mxu0 0.0
    %132 = vmatpush2.msra.mxu0 0.0
    %133 = vmatprep.subr.mxu0 0.0
    %134 = vmatpush2.msra.mxu0 0.0
    %135 = vmatprep.subr.mxu0 0.0
    %136 = vmatpush2.msra.mxu0 0.0
    %137 = vmatprep.mubr.f32.mxu0 0.0
    %138 = vmatmul.mubr.f32.gmra.mxu0 %v58
    %v139 = vpop.f32.mrf.mxu0
    %v140 = vadd.f32 %v39, %v139
    %v141 = vpop.f32.mrf.mxu0
    %142 = vmatprep.mubr.f32.mxu0 0.0
    %143 = vmatmul.mubr.f32.gmra.mxu0 %v61
    %v144 = vpop.f32.mrf.mxu0
    %v145 = vadd.f32 %v44, %v144
    %v146 = vpop.f32.mrf.mxu0
    %147 = vmatprep.mubr.f32.mxu0 0.0
    %148 = vmatmul.mubr.f32.gmra.mxu0 %v64
    %v149 = vpop.f32.mrf.mxu0
    %v150 = vadd.f32 %v49, %v149
    %v151 = vpop.f32.mrf.mxu0
    %152 = vmatprep.mubr.f32.mxu0 0.0
    %153 = vmatmul.mubr.f32.gmra.mxu0 %v67
    %v154 = vpop.f32.mrf.mxu0
    %v155 = vadd.f32 %v54, %v154
    %v156 = vpop.f32.mrf.mxu0
    %157 = vdwg.mxu0
    %vm158 = vcmp.gt.f32.partialorder %v140, 0.0
    %vm159 = vcmp.gt.f32.partialorder %v145, 0.0
    %vm160 = vcmp.gt.f32.partialorder %v150, 0.0
    %vm161 = vcmp.gt.f32.partialorder %v155, 0.0
    %v162 = vmin.f32 %v140, 0.0
    %v163 = vmin.f32 %v145, 0.0
    %v164 = vmin.f32 %v150, 0.0
    %v165 = vmin.f32 %v155, 0.0
    %v166 = vmul.f32 %v162, 1.442695
    %v167 = vpow.pop %v166
    %v168 = vmul.f32 %v163, 1.442695
    %v169 = vpow.pop %v168
    %v170 = vmul.f32 %v164, 1.442695
    %v171 = vpow.pop %v170
    %v172 = vmul.f32 %v165, 1.442695
    %v173 = vpow.pop %v172
    %v174 = vsub.f32 %v167, 1.0
    %v175 = vsub.f32 %v169, 1.0
    %v176 = vsub.f32 %v171, 1.0
    %v177 = vsub.f32 %v173, 1.0
    %v178 = vsel %vm158, %v140, %v174
    %v179 = vsel %vm159, %v145, %v175
    %v180 = vsel %vm160, %v150, %v176
    %v181 = vsel %vm161, %v155, %v177
    %v182 = vld [vmem:[%s3] sm:$0xff]
    %v183 = vld [vmem:[%s3 + $0x8] sm:$0xff]
    %v184 = vld [vmem:[%s3 + $0x10] sm:$0xff]
    %v185 = vld [vmem:[%s3 + $0x18] sm:$0xff]
    %v186 = vld [vmem:[%s4] sm:$0xff]
    %v187 = vld [vmem:[%s4 + $0x8] sm:$0xff]
    %v188 = vld [vmem:[%s4 + $0x10] sm:$0xff]
    %v189 = vld [vmem:[%s4 + $0x18] sm:$0xff]
    %191 = vset.pattern.permute.xlu0 0
    %192 = vperm.xlu0 %191, %v186
    %v193 = vpop.permute.xlu0 %192
    %196 = vset.pattern.permute.xlu0 0
    %197 = vperm.xlu0 %196, %v187
    %v198 = vpop.permute.xlu0 %197
    %201 = vset.pattern.permute.xlu0 0
    %202 = vperm.xlu0 %201, %v188
    %v203 = vpop.permute.xlu0 %202
    %206 = vset.pattern.permute.xlu0 0
    %207 = vperm.xlu0 %206, %v189
    %v208 = vpop.permute.xlu0 %207
    %vm210 = vcmask 261120
    %v212 = vsel %vm210, %v182, 0
    %v215 = vsel %vm210, %v183, 0
    %v218 = vsel %vm210, %v184, 0
    %v221 = vsel %vm210, %v185, 0
    %223 = vmatprep.subr.mxu0 0.0
    %224 = vmatpush1.msra.mxu0 0.0
    %225 = vmatprep.subr.mxu0 0.0
    %226 = vmatpush1.msra.mxu0 0.0
    %227 = vmatprep.subr.mxu0 0.0
    %228 = vmatpush1.msra.mxu0 0.0
    %229 = vmatprep.subr.mxu0 0.0
    %230 = vmatpush1.msra.mxu0 0.0
    %231 = vmatprep.subr.mxu0 0.0
    %232 = vmatpush1.msra.mxu0 0.0
    %233 = vmatprep.subr.mxu0 0.0
    %234 = vmatpush1.msra.mxu0 0.0
    %235 = vmatprep.subr.mxu0 0.0
    %236 = vmatpush1.msra.mxu0 0.0
    %237 = vmatprep.subr.mxu0 0.0
    %238 = vmatpush1.msra.mxu0 0.0
    %239 = vmatprep.subr.mxu0 0.0
    %240 = vmatpush1.msra.mxu0 0.0
    %241 = vmatprep.subr.mxu0 0.0
    %242 = vmatpush1.msra.mxu0 0.0
    %243 = vmatprep.subr.mxu0 0.0
    %244 = vmatpush1.msra.mxu0 0.0
    %245 = vmatprep.subr.mxu0 0.0
    %246 = vmatpush1.msra.mxu0 0.0
    %247 = vmatprep.subr.mxu0 0.0
    %248 = vmatpush1.msra.mxu0 %v181
    %249 = vmatprep.subr.mxu0 0.0
    %250 = vmatpush1.msra.mxu0 %v180
    %251 = vmatprep.subr.mxu0 0.0
    %252 = vmatpush1.msra.mxu0 %v179
    %253 = vmatprep.subr.mxu0 0.0
    %254 = vmatpush1.msra.mxu0 %v178
    %255 = vmatprep.subr.mxu0 0.0
    %256 = vmatpush2.msra.mxu0 0.0
    %257 = vmatprep.subr.mxu0 0.0
    %258 = vmatpush2.msra.mxu0 0.0
    %259 = vmatprep.subr.mxu0 0.0
    %260 = vmatpush2.msra.mxu0 0.0
    %261 = vmatprep.subr.mxu0 0.0
    %262 = vmatpush2.msra.mxu0 0.0
    %263 = vmatprep.subr.mxu0 0.0
    %264 = vmatpush2.msra.mxu0 0.0
    %265 = vmatprep.subr.mxu0 0.0
    %266 = vmatpush2.msra.mxu0 0.0
    %267 = vmatprep.subr.mxu0 0.0
    %268 = vmatpush2.msra.mxu0 0.0
    %269 = vmatprep.subr.mxu0 0.0
    %270 = vmatpush2.msra.mxu0 0.0
    %271 = vmatprep.subr.mxu0 0.0
    %272 = vmatpush2.msra.mxu0 0.0
    %273 = vmatprep.subr.mxu0 0.0
    %274 = vmatpush2.msra.mxu0 0.0
    %275 = vmatprep.subr.mxu0 0.0
    %276 = vmatpush2.msra.mxu0 0.0
    %277 = vmatprep.subr.mxu0 0.0
    %278 = vmatpush2.msra.mxu0 0.0
    %279 = vmatprep.subr.mxu0 0.0
    %280 = vmatpush2.msra.mxu0 0.0
    %281 = vmatprep.subr.mxu0 0.0
    %282 = vmatpush2.msra.mxu0 0.0
    %283 = vmatprep.subr.mxu0 0.0
    %284 = vmatpush2.msra.mxu0 0.0
    %285 = vmatprep.subr.mxu0 0.0
    %286 = vmatpush2.msra.mxu0 0.0
    %287 = vmatprep.mubr.f32.mxu0 0.0
    %288 = vmatmul.mubr.f32.gmra.mxu0 %v212
    %v289 = vpop.f32.mrf.mxu0
    %v290 = vadd.f32 %v193, %v289
    %v291 = vpop.f32.mrf.mxu0
    %292 = vmatprep.mubr.f32.mxu0 0.0
    %293 = vmatmul.mubr.f32.gmra.mxu0 %v215
    %v294 = vpop.f32.mrf.mxu0
    %v295 = vadd.f32 %v198, %v294
    %v296 = vpop.f32.mrf.mxu0
    %297 = vmatprep.mubr.f32.mxu0 0.0
    %298 = vmatmul.mubr.f32.gmra.mxu0 %v218
    %v299 = vpop.f32.mrf.mxu0
    %v300 = vadd.f32 %v203, %v299
    %v301 = vpop.f32.mrf.mxu0
    %302 = vmatprep.mubr.f32.mxu0 0.0
    %303 = vmatmul.mubr.f32.gmra.mxu0 %v221
    %v304 = vpop.f32.mrf.mxu0
    %v305 = vadd.f32 %v208, %v304
    %v306 = vpop.f32.mrf.mxu0
    %307 = vdwg.mxu0
    %vm308 = vcmp.gt.f32.partialorder %v290, 0.0
    %vm309 = vcmp.gt.f32.partialorder %v295, 0.0
    %vm310 = vcmp.gt.f32.partialorder %v300, 0.0
    %vm311 = vcmp.gt.f32.partialorder %v305, 0.0
    %v312 = vmin.f32 %v290, 0.0
    %v313 = vmin.f32 %v295, 0.0
    %v314 = vmin.f32 %v300, 0.0
    %v315 = vmin.f32 %v305, 0.0
    %v316 = vmul.f32 %v312, 1.442695
    %v317 = vpow.pop %v316
    %v318 = vmul.f32 %v313, 1.442695
    %v319 = vpow.pop %v318
    %v320 = vmul.f32 %v314, 1.442695
    %v321 = vpow.pop %v320
    %v322 = vmul.f32 %v315, 1.442695
    %v323 = vpow.pop %v322
    %v324 = vsub.f32 %v317, 1.0
    %v325 = vsub.f32 %v319, 1.0
    %v326 = vsub.f32 %v321, 1.0
    %v327 = vsub.f32 %v323, 1.0
    %v328 = vsel %vm308, %v290, %v324
    %v329 = vsel %vm309, %v295, %v325
    %v330 = vsel %vm310, %v300, %v326
    %v331 = vsel %vm311, %v305, %v327
    %v332 = vld [vmem:[%s5] sm:$0xf]
    %v333 = vld [vmem:[%s6] sm:$0xf]
    %335 = vset.pattern.permute.xlu0 0
    %336 = vperm.xlu0 %335, %v333
    %v337 = vpop.permute.xlu0 %336
    %v340 = vsel %vm210, %v332, 0
    %342 = vmatprep.subr.mxu0 0.0
    %343 = vmatpush1.msra.mxu0 0.0
    %344 = vmatprep.subr.mxu0 0.0
    %345 = vmatpush1.msra.mxu0 0.0
    %346 = vmatprep.subr.mxu0 0.0
    %347 = vmatpush1.msra.mxu0 0.0
    %348 = vmatprep.subr.mxu0 0.0
    %349 = vmatpush1.msra.mxu0 0.0
    %350 = vmatprep.subr.mxu0 0.0
    %351 = vmatpush1.msra.mxu0 0.0
    %352 = vmatprep.subr.mxu0 0.0
    %353 = vmatpush1.msra.mxu0 0.0
    %354 = vmatprep.subr.mxu0 0.0
    %355 = vmatpush1.msra.mxu0 0.0
    %356 = vmatprep.subr.mxu0 0.0
    %357 = vmatpush1.msra.mxu0 0.0
    %358 = vmatprep.subr.mxu0 0.0
    %359 = vmatpush1.msra.mxu0 0.0
    %360 = vmatprep.subr.mxu0 0.0
    %361 = vmatpush1.msra.mxu0 0.0
    %362 = vmatprep.subr.mxu0 0.0
    %363 = vmatpush1.msra.mxu0 0.0
    %364 = vmatprep.subr.mxu0 0.0
    %365 = vmatpush1.msra.mxu0 0.0
    %366 = vmatprep.subr.mxu0 0.0
    %367 = vmatpush1.msra.mxu0 %v331
    %368 = vmatprep.subr.mxu0 0.0
    %369 = vmatpush1.msra.mxu0 %v330
    %370 = vmatprep.subr.mxu0 0.0
    %371 = vmatpush1.msra.mxu0 %v329
    %372 = vmatprep.subr.mxu0 0.0
    %373 = vmatpush1.msra.mxu0 %v328
    %374 = vmatprep.subr.mxu0 0.0
    %375 = vmatpush2.msra.mxu0 0.0
    %376 = vmatprep.subr.mxu0 0.0
    %377 = vmatpush2.msra.mxu0 0.0
    %378 = vmatprep.subr.mxu0 0.0
    %379 = vmatpush2.msra.mxu0 0.0
    %380 = vmatprep.subr.mxu0 0.0
    %381 = vmatpush2.msra.mxu0 0.0
    %382 = vmatprep.subr.mxu0 0.0
    %383 = vmatpush2.msra.mxu0 0.0
    %384 = vmatprep.subr.mxu0 0.0
    %385 = vmatpush2.msra.mxu0 0.0
    %386 = vmatprep.subr.mxu0 0.0
    %387 = vmatpush2.msra.mxu0 0.0
    %388 = vmatprep.subr.mxu0 0.0
    %389 = vmatpush2.msra.mxu0 0.0
    %390 = vmatprep.subr.mxu0 0.0
    %391 = vmatpush2.msra.mxu0 0.0
    %392 = vmatprep.subr.mxu0 0.0
    %393 = vmatpush2.msra.mxu0 0.0
    %394 = vmatprep.subr.mxu0 0.0
    %395 = vmatpush2.msra.mxu0 0.0
    %396 = vmatprep.subr.mxu0 0.0
    %397 = vmatpush2.msra.mxu0 0.0
    %398 = vmatprep.subr.mxu0 0.0
    %399 = vmatpush2.msra.mxu0 0.0
    %400 = vmatprep.subr.mxu0 0.0
    %401 = vmatpush2.msra.mxu0 0.0
    %402 = vmatprep.subr.mxu0 0.0
    %403 = vmatpush2.msra.mxu0 0.0
    %404 = vmatprep.subr.mxu0 0.0
    %405 = vmatpush2.msra.mxu0 0.0
    %406 = vmatprep.mubr.f32.mxu0 0.0
    %407 = vmatmul.mubr.f32.gmra.mxu0 %v340
    %v408 = vpop.f32.mrf.mxu0
    %v409 = vadd.f32 %v337, %v408
    %v410 = vpop.f32.mrf.mxu0
    %411 = vdwg.mxu0
    %v412 = vsel %vm69, %v409, -inf
    %v413 = vrot.slane %v412, 4
    %v414 = vmax.f32 %v412, %v413
    %v415 = vrot.slane %v414, 2
    %v416 = vmax.f32 %v414, %v415
    %v417 = vrot.slane %v416, 1
    %v418 = vmax.f32 %v416, %v417
    %v419 = vsub.f32 %v409, %v418
    %v420 = vmul.f32 %v419, 1.442695
    %v421 = vpow.pop %v420
    %v422 = vsel %vm69, %v421, 0.0
    %v423 = vrot.slane %v422, 4
    %v424 = vadd.f32 %v422, %v423
    %v425 = vrot.slane %v424, 2
    %v426 = vadd.f32 %v424, %v425
    %v427 = vrot.slane %v426, 1
    %v428 = vadd.f32 %v426, %v427
    %v429 = vrcp.pop %v428
    %v430 = vmul.f32 %v421, %v429
    %431 = vst [vmem:[#allocation2] sm:$0xf] %v430
    // Predicated region
    $region30: #{tpu_custom_call.1} parent=1 // pred_check
      _
    $region31: #{tpu_custom_call.1} parent=1 // pred_check_branch
      %433 = sbr.rel (0) target = $region33
    $region32: #{tpu_custom_call.1} parent=1 // pred_region
      %s435 = ssub.s32 64, 64
      %436 = vsyncadd [#allocation3], %s435
      %s438 = sshll.u32 [#allocation2], 4
      %s439 = int_to_ptr.vmem [resolvable:$true] %s438
      %441 = dma.vmem_to_hbm [thread:$0]  %s439, 64, %s7, [#allocation3]
    $region33: #{tpu_custom_call.1} parent=1 // pred_fallthru
      _
    // Predicated region
    $region34: #{tpu_custom_call.1} parent=1 // pred_check
      _
    $region35: #{tpu_custom_call.1} parent=1 // pred_check_branch
      %443 = sbr.rel (0) target = $region37
    $region36: #{tpu_custom_call.1} parent=1 // pred_region
      %444 = dma.done [#allocation3], 64
    $region37: #{tpu_custom_call.1} parent=1 // pred_fallthru
      _
    %445 = vsyncpa [#allocation3], 1

</llo_original>
